<compile_context>
chip_gen: v7x
topology: tpu7x:2x2x1
jax: 0.10.0
libtpu: 0.0.40
codegen_flags: <defaults>
</compile_context>

<pallas_src>
import jax
import jax.numpy as jnp
from jax.experimental import pallas as pl
from jax.experimental.pallas import tpu as pltpu

_LANE = 128
_MAX_TILE = 65536  # lane-tile cap; >= ~1 MiB per input block at C=4 f32


def _make_kernel(*, tile_c, cols, k_sub, mask_tail):
    """Build the kernel body with compile-time constants closed over."""

    def kernel(x_ref, t_ref, m_ref, sum_in_ref, sum_all_ref, acc_in, acc_all):
        # Grid = (SPLIT, N, K_sub); axes 0/1 are "parallel", axis 2 is the
        # lane-tile reduction axis ("arbitrary", iterates fastest).
        k = pl.program_id(2)

        @pl.when(k == 0)
        def _():
            acc_in[...] = jnp.zeros_like(acc_in)
            acc_all[...] = jnp.zeros_like(acc_all)

        # Upcast on the VPU (inputs may be bf16 in HBM; do not pre-cast).
        diff = jnp.abs(x_ref[...].astype(jnp.float32) -
                       t_ref[...].astype(jnp.float32))

        if mask_tail:
            # Zero lanes past the true extent (ragged last tile and/or the
            # duplicated clamped tile of the core split).  Must be applied to
            # diff so BOTH sums exclude the unspecified out-of-bounds data.
            g = pl.program_id(0) * k_sub + k          # unclamped global tile idx
            lane = jax.lax.broadcasted_iota(jnp.int32, diff.shape, dimension=2)
            diff = jnp.where(g * tile_c + lane < cols, diff, 0.0)

        # Mask block is (1, 1, tile_c) int8; broadcast over C on the VPU.
        m = m_ref[...].astype(jnp.float32)

        acc_in[...] += diff * m     # masked sum partials
        acc_all[...] += diff        # total sum partials (sum_out derived later)

        @pl.when(k == pl.num_programs(2) - 1)
        def _():
            # One cross-lane reduction + one unmasked block store per
            # (split, batch) pair; scalar broadcast over the 128 output lanes,
            # the wrapper reads lane 0.
            sum_in_ref[...] = jnp.zeros_like(sum_in_ref) + jnp.sum(acc_in[...])
            sum_all_ref[...] = jnp.zeros_like(sum_all_ref) + jnp.sum(acc_all[...])

    return kernel


def _vmem_limit_bytes():
    """Scoped VMEM budget, derived per TPU generation with headroom."""
    cap = 64 * 1024 * 1024  # conservative fallback (v7x physical VMEM)
    try:
        info = pltpu.get_tpu_info()
        cap = int(getattr(info, "vmem_capacity_bytes", cap))
    except Exception:
        pass
    # ~75% of physical, capped at 96 MiB (fine on v5e/v6e's 128 MiB; on v7x's
    # 64 MiB this yields a 48 MiB scoped limit).
    return int(min(cap * 3 // 4, 96 * 1024 * 1024))


def _choose_tile_c(cols, C, itemsize, vmem_limit_bytes):
    """Largest lane-tile keeping double-buffered blocks + f32 accumulators
    inside ~half the scoped-VMEM budget (so v7x's 64 MiB is respected)."""
    cols_up = pl.cdiv(cols, _LANE) * _LANE
    per_col = 2 * (2 * C * itemsize + 1)   # x + t (C rows) + int8 mask, double-buffered
    per_col += 2 * C * 4                   # two f32 scratch accumulators (single-buffered)
    budget = vmem_limit_bytes // 2         # headroom for outputs / compiler scratch
    max_by_vmem = max(_LANE, budget // max(per_col, 1))
    tile = min(_MAX_TILE, max_by_vmem, cols_up)
    return max(_LANE, (tile // _LANE) * _LANE)


def masked_l1(input_im, target_im, mask, num_ch, tile_c_override=None):
    """Pallas equivalent of MaskedL1.forward.

    input_im, target_im: (N, C, H, W) float (f32 or bf16)
    mask:                (N, 1, H, W) bool
    num_ch:              int; when > 1 it must equal C (mask broadcast over C)
    Returns (loss_in, loss_out) as float32 scalars.
    """
    N, C, H, W = input_im.shape
    assert target_im.shape == input_im.shape
    assert mask.shape == (N, 1, H, W)
    if num_ch > 1:
        # torch.cat([mask]*num_ch, dim=1) is replaced by an in-kernel sublane
        # broadcast; valid only when the replication factor equals C.
        assert num_ch == C

    cols = H * W
    x = input_im.reshape(N, C, cols)
    t = target_im.reshape(N, C, cols)
    m = mask.reshape(N, 1, cols).astype(jnp.int8)  # narrow mask, not replicated

    vmem_limit = _vmem_limit_bytes()
    itemsize = jnp.dtype(x.dtype).itemsize
    tile_c = tile_c_override or _choose_tile_c(cols, C, itemsize, vmem_limit)
    assert tile_c % _LANE == 0

    num_tiles = pl.cdiv(cols, tile_c)
    split = 2 if num_tiles >= 2 else 1     # both v7x TensorCores even at N == 1
    k_sub = pl.cdiv(num_tiles, split)
    # Tail masking is compiled in only when needed: ragged last tile and/or
    # the core split over-covering an odd tile count.
    mask_tail = (cols % tile_c != 0) or (split * k_sub != num_tiles)

    if split > 1:
        def tile_idx(c, k):
            # Clamp the over-coverage tile; its contribution is zeroed by the
            # in-kernel validity mask (avoids an out-of-bounds DMA).
            return jnp.minimum(c * k_sub + k, num_tiles - 1)
    else:
        def tile_idx(c, k):
            return k

    in_spec_xt = pl.BlockSpec((1, C, tile_c), lambda c, n, k: (n, 0, tile_idx(c, k)))
    in_spec_m = pl.BlockSpec((1, 1, tile_c), lambda c, n, k: (n, 0, tile_idx(c, k)))
    out_spec = pl.BlockSpec((1, 1, 1, _LANE), lambda c, n, k: (c, n, 0, 0))

    kernel = _make_kernel(tile_c=tile_c, cols=cols, k_sub=k_sub, mask_tail=mask_tail)

    sum_in, sum_all = pl.pallas_call(
        kernel,
        out_shape=(
            jax.ShapeDtypeStruct((split, N, 1, _LANE), jnp.float32),
            jax.ShapeDtypeStruct((split, N, 1, _LANE), jnp.float32),
        ),
        grid_spec=pltpu.PrefetchScalarGridSpec(
            num_scalar_prefetch=0,
            grid=(split, N, k_sub),
            in_specs=[in_spec_xt, in_spec_xt, in_spec_m],
            out_specs=(out_spec, out_spec),
            scratch_shapes=[
                pltpu.VMEM((1, C, tile_c), jnp.float32),
                pltpu.VMEM((1, C, tile_c), jnp.float32),
            ],
        ),
        compiler_params=pltpu.CompilerParams(
            dimension_semantics=("parallel", "parallel", "arbitrary"),
            vmem_limit_bytes=vmem_limit,
        ),
    )(x, t, m)

    numel = jnp.float32(N * C * H * W)  # numel of the ORIGINAL diff tensor
    s_in = jnp.sum(sum_in[:, :, 0, 0])
    s_all = jnp.sum(sum_all[:, :, 0, 0])
    loss_in = jnp.nan_to_num(s_in / numel)
    loss_out = jnp.nan_to_num((s_all - s_in) / numel)
    return loss_in, loss_out


def _reference(input_im, target_im, mask, num_ch):
    if num_ch > 1:
        mask = jnp.concatenate([mask] * num_ch, axis=1)
    diff = jnp.abs(input_im - target_im)
    numel = diff.size
    loss_in = jnp.nan_to_num(jnp.sum(jnp.where(mask, diff, 0.0)) / numel)
    loss_out = jnp.nan_to_num(jnp.sum(jnp.where(mask, 0.0, diff)) / numel)
    return loss_in, loss_out


if __name__ == "__main__":
    key = jax.random.PRNGKey(0)
    k1, k2, k3, k4, k5, k6 = jax.random.split(key, 6)

    # --- test 1: small aligned shape, jitted, auto-sized tile ---
    N, C, H, W = 2, 4, 16, 16
    x1 = jax.random.normal(k1, (N, C, H, W), dtype=jnp.float32)
    t1 = jax.random.normal(k2, (N, C, H, W), dtype=jnp.float32)
    m1 = jax.random.bernoulli(k3, p=0.3, shape=(N, 1, H, W))  # bool

    fn = jax.jit(masked_l1, static_argnums=(3,))
    loss_in, loss_out = fn(x1, t1, m1, C)
    jax.block_until_ready((loss_in, loss_out))
    ref_in, ref_out = _reference(x1, t1, m1, C)
    assert jnp.allclose(loss_in, ref_in, rtol=1e-5, atol=1e-6), (loss_in, ref_in)
    assert jnp.allclose(loss_out, ref_out, rtol=1e-5, atol=1e-6), (loss_out, ref_out)

    # --- test 2: ragged lane tail + odd tile count (exercises the in-kernel
    # validity mask, the 2-way core split, and the clamped duplicate tile) ---
    N, C, H, W = 1, 4, 16, 20          # cols = 320; forced tile_c = 128 -> 3 tiles
    x2 = jax.random.normal(k4, (N, C, H, W), dtype=jnp.float32)
    t2 = jax.random.normal(k5, (N, C, H, W), dtype=jnp.float32)
    m2 = jax.random.bernoulli(k6, p=0.5, shape=(N, 1, H, W))

    li2, lo2 = masked_l1(x2, t2, m2, C, tile_c_override=128)
    jax.block_until_ready((li2, lo2))
    ri2, ro2 = _reference(x2, t2, m2, C)
    assert jnp.allclose(li2, ri2, rtol=1e-5, atol=1e-6), (li2, ri2)
    assert jnp.allclose(lo2, ro2, rtol=1e-5, atol=1e-6), (lo2, ro2)

    print("KERNEL_OK")
</pallas_src>

<mosaic_0001>
module attributes {stable_mosaic.version = 11 : i64} {
  func.func @kernel(%arg0: i32, %arg1: i32, %arg2: i32, %arg3: memref<1x4x256xf32, #tpu.memory_space<vmem>>, %arg4: memref<1x4x256xf32, #tpu.memory_space<vmem>>, %arg5: memref<1x1x256xi8, #tpu.memory_space<vmem>>, %arg6: memref<1x1x1x128xf32, #tpu.memory_space<vmem>>, %arg7: memref<1x1x1x128xf32, #tpu.memory_space<vmem>>, %arg8: memref<1x4x256xf32, #tpu.memory_space<vmem>>, %arg9: memref<1x4x256xf32, #tpu.memory_space<vmem>>) attributes {dimension_semantics = [#tpu.dimension_semantics<parallel>, #tpu.dimension_semantics<parallel>, #tpu.dimension_semantics<arbitrary>], iteration_bounds = array<i64: 1, 2, 1>, scalar_prefetch = 0 : i64, scratch_operands = 2 : i64, tpu.core_type = #tpu.core_type<tc>, window_params = [{transform_indices = @transform_0, window_bounds = array<i64: 1, 4, 256>}, {transform_indices = @transform_1, window_bounds = array<i64: 1, 4, 256>}, {transform_indices = @transform_2, window_bounds = array<i64: 1, 1, 256>}, {transform_indices = @transform_3, window_bounds = array<i64: 1, 1, 1, 128>}, {transform_indices = @transform_4, window_bounds = array<i64: 1, 1, 1, 128>}]} {
    %c0_i32 = arith.constant 0 : i32
    %0 = arith.cmpi eq, %arg2, %c0_i32 : i32
    %1 = arith.extui %0 : i1 to i32
    %c0_i32_0 = arith.constant 0 : i32
    %2 = arith.cmpi ne, %1, %c0_i32_0 : i32
    scf.if %2 {
      %cst = arith.constant 0.000000e+00 : f32
      %20 = vector.broadcast %cst : f32 to vector<1x4x256xf32>
      %c0_23 = arith.constant 0 : index
      %c0_24 = arith.constant 0 : index
      %c0_25 = arith.constant 0 : index
      %21 = vector.load %arg8[%c0_23, %c0_24, %c0_25] : memref<1x4x256xf32, #tpu.memory_space<vmem>>, vector<1x4x256xf32>
      tpu.vector_store %arg8[%c0_23, %c0_24, %c0_25], %20 {strides = array<i32>} : memref<1x4x256xf32, #tpu.memory_space<vmem>>, vector<1x4x256xf32>,
      %cst_26 = arith.constant 0.000000e+00 : f32
      %22 = vector.broadcast %cst_26 : f32 to vector<1x4x256xf32>
      %c0_27 = arith.constant 0 : index
      %c0_28 = arith.constant 0 : index
      %c0_29 = arith.constant 0 : index
      %23 = vector.load %arg9[%c0_27, %c0_28, %c0_29] : memref<1x4x256xf32, #tpu.memory_space<vmem>>, vector<1x4x256xf32>
      tpu.vector_store %arg9[%c0_27, %c0_28, %c0_29], %22 {strides = array<i32>} : memref<1x4x256xf32, #tpu.memory_space<vmem>>, vector<1x4x256xf32>,
    } else {
    }
    %c0 = arith.constant 0 : index
    %c0_1 = arith.constant 0 : index
    %c0_2 = arith.constant 0 : index
    %3 = vector.load %arg3[%c0, %c0_1, %c0_2] : memref<1x4x256xf32, #tpu.memory_space<vmem>>, vector<1x4x256xf32>
    %c0_3 = arith.constant 0 : index
    %c0_4 = arith.constant 0 : index
    %c0_5 = arith.constant 0 : index
    %4 = vector.load %arg4[%c0_3, %c0_4, %c0_5] : memref<1x4x256xf32, #tpu.memory_space<vmem>>, vector<1x4x256xf32>
    %5 = arith.subf %3, %4 : vector<1x4x256xf32>
    %6 = math.absf %5 : vector<1x4x256xf32>
    %c0_6 = arith.constant 0 : index
    %c0_7 = arith.constant 0 : index
    %c0_8 = arith.constant 0 : index
    %7 = vector.load %arg5[%c0_6, %c0_7, %c0_8] : memref<1x1x256xi8, #tpu.memory_space<vmem>>, vector<1x1x256xi8>
    %8 = arith.sitofp %7 : vector<1x1x256xi8> to vector<1x1x256xf32>
    %c0_9 = arith.constant 0 : index
    %c0_10 = arith.constant 0 : index
    %c0_11 = arith.constant 0 : index
    %9 = vector.load %arg8[%c0_9, %c0_10, %c0_11] : memref<1x4x256xf32, #tpu.memory_space<vmem>>, vector<1x4x256xf32>
    %10 = vector.broadcast %8 : vector<1x1x256xf32> to vector<1x4x256xf32>
    %11 = arith.mulf %6, %10 : vector<1x4x256xf32>
    %12 = arith.addf %9, %11 : vector<1x4x256xf32>
    %c0_12 = arith.constant 0 : index
    %c0_13 = arith.constant 0 : index
    %c0_14 = arith.constant 0 : index
    %13 = vector.load %arg8[%c0_12, %c0_13, %c0_14] : memref<1x4x256xf32, #tpu.memory_space<vmem>>, vector<1x4x256xf32>
    tpu.vector_store %arg8[%c0_12, %c0_13, %c0_14], %12 {strides = array<i32>} : memref<1x4x256xf32, #tpu.memory_space<vmem>>, vector<1x4x256xf32>,
    %c0_15 = arith.constant 0 : index
    %c0_16 = arith.constant 0 : index
    %c0_17 = arith.constant 0 : index
    %14 = vector.load %arg9[%c0_15, %c0_16, %c0_17] : memref<1x4x256xf32, #tpu.memory_space<vmem>>, vector<1x4x256xf32>
    %15 = arith.addf %14, %6 : vector<1x4x256xf32>
    %c0_18 = arith.constant 0 : index
    %c0_19 = arith.constant 0 : index
    %c0_20 = arith.constant 0 : index
    %16 = vector.load %arg9[%c0_18, %c0_19, %c0_20] : memref<1x4x256xf32, #tpu.memory_space<vmem>>, vector<1x4x256xf32>
    tpu.vector_store %arg9[%c0_18, %c0_19, %c0_20], %15 {strides = array<i32>} : memref<1x4x256xf32, #tpu.memory_space<vmem>>, vector<1x4x256xf32>,
    %c0_i32_21 = arith.constant 0 : i32
    %17 = arith.cmpi eq, %arg2, %c0_i32_21 : i32
    %18 = arith.extui %17 : i1 to i32
    %c0_i32_22 = arith.constant 0 : i32
    %19 = arith.cmpi ne, %18, %c0_i32_22 : i32
    scf.if %19 {
      %cst = arith.constant 0.000000e+00 : f32
      %20 = vector.broadcast %cst : f32 to vector<1x1x1x128xf32>
      %c0_23 = arith.constant 0 : index
      %c0_24 = arith.constant 0 : index
      %c0_25 = arith.constant 0 : index
      %21 = vector.load %arg8[%c0_23, %c0_24, %c0_25] : memref<1x4x256xf32, #tpu.memory_space<vmem>>, vector<1x4x256xf32>
      %22 = vector.shape_cast %21 : vector<1x4x256xf32> to vector<1x1x4x256xf32>
      %cst_26 = arith.constant dense<0.000000e+00> : vector<1xf32>
      %23 = vector.multi_reduction <add>, %22, %cst_26 [1, 2, 3] : vector<1x1x4x256xf32> to vector<1xf32>
      %24 = vector.shape_cast %23 : vector<1xf32> to vector<1x1x1x1xf32>
      %25 = vector.extract %24[0, 0, 0, 0] : f32 from vector<1x1x1x1xf32>
      %26 = vector.broadcast %25 : f32 to vector<1x1x1x128xf32>
      %27 = arith.addf %20, %26 : vector<1x1x1x128xf32>
      %c0_27 = arith.constant 0 : index
      %c0_28 = arith.constant 0 : index
      %c0_29 = arith.constant 0 : index
      %c0_30 = arith.constant 0 : index
      %28 = vector.load %arg6[%c0_27, %c0_28, %c0_29, %c0_30] : memref<1x1x1x128xf32, #tpu.memory_space<vmem>>, vector<1x1x1x128xf32>
      tpu.vector_store %arg6[%c0_27, %c0_28, %c0_29, %c0_30], %27 {strides = array<i32>} : memref<1x1x1x128xf32, #tpu.memory_space<vmem>>, vector<1x1x1x128xf32>,
      %cst_31 = arith.constant 0.000000e+00 : f32
      %29 = vector.broadcast %cst_31 : f32 to vector<1x1x1x128xf32>
      %c0_32 = arith.constant 0 : index
      %c0_33 = arith.constant 0 : index
      %c0_34 = arith.constant 0 : index
      %30 = vector.load %arg9[%c0_32, %c0_33, %c0_34] : memref<1x4x256xf32, #tpu.memory_space<vmem>>, vector<1x4x256xf32>
      %31 = vector.shape_cast %30 : vector<1x4x256xf32> to vector<1x1x4x256xf32>
      %cst_35 = arith.constant dense<0.000000e+00> : vector<1xf32>
      %32 = vector.multi_reduction <add>, %31, %cst_35 [1, 2, 3] : vector<1x1x4x256xf32> to vector<1xf32>
      %33 = vector.shape_cast %32 : vector<1xf32> to vector<1x1x1x1xf32>
      %34 = vector.extract %33[0, 0, 0, 0] : f32 from vector<1x1x1x1xf32>
      %35 = vector.broadcast %34 : f32 to vector<1x1x1x128xf32>
      %36 = arith.addf %29, %35 : vector<1x1x1x128xf32>
      %c0_36 = arith.constant 0 : index
      %c0_37 = arith.constant 0 : index
      %c0_38 = arith.constant 0 : index
      %c0_39 = arith.constant 0 : index
      %37 = vector.load %arg7[%c0_36, %c0_37, %c0_38, %c0_39] : memref<1x1x1x128xf32, #tpu.memory_space<vmem>>, vector<1x1x1x128xf32>
      tpu.vector_store %arg7[%c0_36, %c0_37, %c0_38, %c0_39], %36 {strides = array<i32>} : memref<1x1x1x128xf32, #tpu.memory_space<vmem>>, vector<1x1x1x128xf32>,
    } else {
    }
    return
  }
  func.func @transform_0(%arg0: i32, %arg1: i32, %arg2: i32) -> (i32, i32, i32) {
    %c0_i32 = arith.constant 0 : i32
    %c0_i32_0 = arith.constant 0 : i32
    return %arg1, %c0_i32, %arg2 : i32, i32, i32
  }
  func.func @transform_1(%arg0: i32, %arg1: i32, %arg2: i32) -> (i32, i32, i32) {
    %c0_i32 = arith.constant 0 : i32
    %c0_i32_0 = arith.constant 0 : i32
    return %arg1, %c0_i32, %arg2 : i32, i32, i32
  }
  func.func @transform_2(%arg0: i32, %arg1: i32, %arg2: i32) -> (i32, i32, i32) {
    %c0_i32 = arith.constant 0 : i32
    %c0_i32_0 = arith.constant 0 : i32
    return %arg1, %c0_i32, %arg2 : i32, i32, i32
  }
  func.func @transform_3(%arg0: i32, %arg1: i32, %arg2: i32) -> (i32, i32, i32, i32) {
    %c0_i32 = arith.constant 0 : i32
    %c0_i32_0 = arith.constant 0 : i32
    %c0_i32_1 = arith.constant 0 : i32
    return %arg0, %arg1, %c0_i32, %c0_i32_0 : i32, i32, i32, i32
  }
  func.func @transform_4(%arg0: i32, %arg1: i32, %arg2: i32) -> (i32, i32, i32, i32) {
    %c0_i32 = arith.constant 0 : i32
    %c0_i32_0 = arith.constant 0 : i32
    %c0_i32_1 = arith.constant 0 : i32
    return %arg0, %arg1, %c0_i32, %c0_i32_0 : i32, i32, i32, i32
  }
}

</mosaic_0001>

<llo_original>
// kernel: masked_l1.1
$region0: #{masked_l1.1}
  #allocation0 [shape = 'u32[]', space=smem, size = 0x4, offset = 0x4, fixed_abs, tag = 'smem constant byte address 0x4 - core index']
  #allocation1 [shape = 'u32[144,128]{1,0:T(1,128)}', space=vmem, size = 0x12000, scoped, tag = 'internal scratch']
  #allocation2 [shape = 'f32[1,4,256]{2,1,0:T(4,128)}', space=vmem, size = 0x1000, scoped, tag = 'scratch operand']
  #allocation3 [shape = 'f32[1,4,256]{2,1,0:T(4,128)}', space=vmem, size = 0x1000, scoped, tag = 'scratch operand']
  %s0 = inlined_call_operand.vmem [shape: f32[2,4,256], index: 0, kind: input, shape index: {}]
  %s1 = inlined_call_operand.vmem [shape: f32[2,4,256], index: 1, kind: input, shape index: {}]
  %s2 = inlined_call_operand.vmem [shape: s8[2,1,256], index: 2, kind: input, shape index: {}]
  %s3 = inlined_call_operand.vmem [shape: f32[1,2,1,128], index: 3, kind: output, shape index: {0}]
  %s4 = inlined_call_operand.vmem [shape: f32[1,2,1,128], index: 4, kind: output, shape index: {1}]
  %5 = xla_tuple %s3, %s4
  %s6 = sld [smem:[#allocation0]]
  $region61: #{masked_l1.1} parent=0
    _
  %s8 = ssub.s32 1, %s6
  %s9 = scalar_select 0, %s8, %s6
  loop: start=0, step=1, limit=4
  $region2: #{masked_l1.1} parent=0 // loop_pre_header
    _
  $region3: #{masked_l1.1} parent=0 // loop_header
    %s11 = sphi 0, %s15
    %p12 = scmp.ge.s32.totalorder %s11, 4
    %s18 = sphi 0, %s37
    %s19 = sphi 0, %s33
    %s20 = sphi 0, %s29
    %s21 = sphi 0, %s18
    %s22 = sphi 0, %s19
    %s23 = sphi 0, %s20
    %s24 = sphi 0, %s21
    %s25 = sphi 0, %s22
    %s26 = sphi 0, %s23
    %s42 = sphi 0, %s44
    %s45 = sphi 0, %s42
    %s46 = sphi 0, %s45
    %s62 = sphi 0, %s46
    %s70 = sphi 0, %s72
    %s73 = sphi 0, %s70
    %s74 = sphi 0, %s73
    %s90 = sphi 0, %s74
    %s98 = sphi 0, %s100
    %s101 = sphi 0, %s98
    %s102 = sphi 0, %s101
    %s118 = sphi 0, %s102
    %s126 = sphi 0, %s128
    %s129 = sphi 0, %s126
    %s130 = sphi 0, %s129
    %s146 = sphi 0, %s130
    %s154 = sphi 0, %s156
    %s157 = sphi 0, %s154
    %s158 = sphi 0, %s157
    %s174 = sphi 0, %s158
  $region4: #{masked_l1.1} parent=0 // loop_header_branch
    %14 = sbr.rel (%p12) target = $region8
  $region5: #{masked_l1.1} parent=0 // loop_body
    %s16 = ssub.s32 %s11, 1
    %s17 = ssub.s32 %s11, 2
    %s27 = sadd.s32 1, %s20
    %p28 = scmp.ge.s32.totalorder %s27, 1
    %s29 = scalar_select %p28, 0, %s27
    %s30 = sadd.s32 1, %s19
    %s31 = scalar_select %p28, %s30, %s19
    %p32 = scmp.ge.s32.totalorder %s31, 2
    %s33 = scalar_select %p32, 0, %s31
    %s34 = sadd.s32 1, %s18
    %s35 = scalar_select %p32, %s34, %s18
    %p36 = scmp.ge.s32.totalorder %s35, 1
    %s37 = scalar_select %p36, 0, %s35
    %s38 = ssub.s32 %s19, %s33
    %s39 = ssub.s32 %s20, %s29
    %s40 = sor.u32 %s38, %s39
    %p41 = scmp.eq.s32.totalorder %s40, 0
    %s43 = sadd.s32 %s42, 1
    %s44 = scalar_select %p41, %s42, %s43
    %p47 = pneg %p41
    %p48 = scmp.eq.s32.totalorder %s11, 1
    %p49 = por %p47, %p48
    %p50 = scmp.ne.s32.totalorder %s42, %s45
    %p51 = scmp.eq.s32.totalorder %s11, 0
    %p52 = por %p50, %p51
    %p53 = scmp.ne.s32.totalorder %s42, %s45
    %p54 = scmp.eq.s32.totalorder %s16, 1
    %p55 = por %p53, %p54
    %p56 = scmp.ne.s32.totalorder %s45, %s46
    %p57 = scmp.eq.s32.totalorder %s16, 0
    %p58 = por %p56, %p57
    %p59 = scmp.ne.s32.totalorder %s45, %s46
    %p60 = scmp.eq.s32.totalorder %s17, 1
    %p61 = por %p59, %p60
    %p63 = scmp.ne.s32.totalorder %s46, %s62
    %p64 = scmp.eq.s32.totalorder %s17, 0
    %p65 = por %p63, %p64
    %s66 = ssub.s32 %s19, %s33
    %s67 = ssub.s32 %s20, %s29
    %s68 = sor.u32 %s66, %s67
    %p69 = scmp.eq.s32.totalorder %s68, 0
    %s71 = sadd.s32 %s70, 1
    %s72 = scalar_select %p69, %s70, %s71
    %p75 = pneg %p69
    %p76 = scmp.eq.s32.totalorder %s11, 1
    %p77 = por %p75, %p76
    %p78 = scmp.ne.s32.totalorder %s70, %s73
    %p79 = scmp.eq.s32.totalorder %s11, 0
    %p80 = por %p78, %p79
    %p81 = scmp.ne.s32.totalorder %s70, %s73
    %p82 = scmp.eq.s32.totalorder %s16, 1
    %p83 = por %p81, %p82
    %p84 = scmp.ne.s32.totalorder %s73, %s74
    %p85 = scmp.eq.s32.totalorder %s16, 0
    %p86 = por %p84, %p85
    %p87 = scmp.ne.s32.totalorder %s73, %s74
    %p88 = scmp.eq.s32.totalorder %s17, 1
    %p89 = por %p87, %p88
    %p91 = scmp.ne.s32.totalorder %s74, %s90
    %p92 = scmp.eq.s32.totalorder %s17, 0
    %p93 = por %p91, %p92
    %s94 = ssub.s32 %s19, %s33
    %s95 = ssub.s32 %s20, %s29
    %s96 = sor.u32 %s94, %s95
    %p97 = scmp.eq.s32.totalorder %s96, 0
    %s99 = sadd.s32 %s98, 1
    %s100 = scalar_select %p97, %s98, %s99
    %p103 = pneg %p97
    %p104 = scmp.eq.s32.totalorder %s11, 1
    %p105 = por %p103, %p104
    %p106 = scmp.ne.s32.totalorder %s98, %s101
    %p107 = scmp.eq.s32.totalorder %s11, 0
    %p108 = por %p106, %p107
    %p109 = scmp.ne.s32.totalorder %s98, %s101
    %p110 = scmp.eq.s32.totalorder %s16, 1
    %p111 = por %p109, %p110
    %p112 = scmp.ne.s32.totalorder %s101, %s102
    %p113 = scmp.eq.s32.totalorder %s16, 0
    %p114 = por %p112, %p113
    %p115 = scmp.ne.s32.totalorder %s101, %s102
    %p116 = scmp.eq.s32.totalorder %s17, 1
    %p117 = por %p115, %p116
    %p119 = scmp.ne.s32.totalorder %s102, %s118
    %p120 = scmp.eq.s32.totalorder %s17, 0
    %p121 = por %p119, %p120
    %s122 = ssub.s32 %s18, %s37
    %s123 = ssub.s32 %s19, %s33
    %s124 = sor.u32 %s122, %s123
    %p125 = scmp.eq.s32.totalorder %s124, 0
    %s127 = sadd.s32 %s126, 1
    %s128 = scalar_select %p125, %s126, %s127
    %p131 = pneg %p125
    %p132 = scmp.eq.s32.totalorder %s11, 1
    %p133 = por %p131, %p132
    %p134 = scmp.ne.s32.totalorder %s126, %s129
    %p135 = scmp.eq.s32.totalorder %s11, 0
    %p136 = por %p134, %p135
    %p137 = scmp.ne.s32.totalorder %s126, %s129
    %p138 = scmp.eq.s32.totalorder %s16, 1
    %p139 = por %p137, %p138
    %p140 = scmp.ne.s32.totalorder %s129, %s130
    %p141 = scmp.eq.s32.totalorder %s16, 0
    %p142 = por %p140, %p141
    %p143 = scmp.ne.s32.totalorder %s129, %s130
    %p144 = scmp.eq.s32.totalorder %s17, 1
    %p145 = por %p143, %p144
    %p147 = scmp.ne.s32.totalorder %s130, %s146
    %p148 = scmp.eq.s32.totalorder %s17, 0
    %p149 = por %p147, %p148
    %s150 = ssub.s32 %s18, %s37
    %s151 = ssub.s32 %s19, %s33
    %s152 = sor.u32 %s150, %s151
    %p153 = scmp.eq.s32.totalorder %s152, 0
    %s155 = sadd.s32 %s154, 1
    %s156 = scalar_select %p153, %s154, %s155
    %p159 = pneg %p153
    %p160 = scmp.eq.s32.totalorder %s11, 1
    %p161 = por %p159, %p160
    %p162 = scmp.ne.s32.totalorder %s154, %s157
    %p163 = scmp.eq.s32.totalorder %s11, 0
    %p164 = por %p162, %p163
    %p165 = scmp.ne.s32.totalorder %s154, %s157
    %p166 = scmp.eq.s32.totalorder %s16, 1
    %p167 = por %p165, %p166
    %p168 = scmp.ne.s32.totalorder %s157, %s158
    %p169 = scmp.eq.s32.totalorder %s16, 0
    %p170 = por %p168, %p169
    %p171 = scmp.ne.s32.totalorder %s157, %s158
    %p172 = scmp.eq.s32.totalorder %s17, 1
    %p173 = por %p171, %p172
    %p175 = scmp.ne.s32.totalorder %s158, %s174
    %p176 = scmp.eq.s32.totalorder %s17, 0
    %p177 = por %p175, %p176
    %p178 = scmp.le.s32.totalorder 1, %s11
    %p179 = scmp.lt.s32.totalorder %s11, 3
    %p180 = pnand %p178, %p179
    %p181 = pneg %p180
    // Predicated region
    $region9: #{masked_l1.1} parent=5 // pred_check
      _
    $region10: #{masked_l1.1} parent=5 // pred_check_branch
      %183 = sbr.rel (%p180) target = $region12
    $region11: #{masked_l1.1} parent=5 // pred_region
      %s184 = ssub.s32 %s11, 1
    $region12: #{masked_l1.1} parent=5 // pred_fallthru
      _
    %p185 = scmp.lt.s32.totalorder %s11, 2
    // Predicated region
    $region13: #{masked_l1.1} parent=5 // pred_check
      %p186 = pneg %p185
    $region14: #{masked_l1.1} parent=5 // pred_check_branch
      %188 = sbr.rel (%p186) target = $region16
    $region15: #{masked_l1.1} parent=5 // pred_region
      // Predicated region
      $region17: #{masked_l1.1} parent=15 // pred_check
        %p189 = pneg %p52
      $region18: #{masked_l1.1} parent=15 // pred_check_branch
        %191 = sbr.rel (%p189) target = $region20
      $region19: #{masked_l1.1} parent=15 // pred_region
        %s192 = smul.u32 2, %s20
        %p193 = scmp.lt.s32.totalorder %s19, 1
        %s194 = scalar_select %p193, %s19, 1
        %p195 = scmp.lt.s32.totalorder %s192, 1
        %s196 = scalar_select %p195, %s192, 1
        %s197 = smul.addr %s194, 2
        %s198 = sadd.s32 %s196, %s197
        %s199 = smul.addr %s198, 4
        %s200 = scalar_lea.vmem %s0, %s199
        %s201 = smul.u32 2, %s20
      $region20: #{masked_l1.1} parent=15 // pred_fallthru
        _
      // Predicated region
      $region21: #{masked_l1.1} parent=15 // pred_check
        %p202 = pneg %p80
      $region22: #{masked_l1.1} parent=15 // pred_check_branch
        %204 = sbr.rel (%p202) target = $region24
      $region23: #{masked_l1.1} parent=15 // pred_region
        %s205 = smul.u32 2, %s20
        %p206 = scmp.lt.s32.totalorder %s19, 1
        %s207 = scalar_select %p206, %s19, 1
        %p208 = scmp.lt.s32.totalorder %s205, 1
        %s209 = scalar_select %p208, %s205, 1
        %s210 = smul.addr %s207, 2
        %s211 = sadd.s32 %s209, %s210
        %s212 = smul.addr %s211, 4
        %s213 = scalar_lea.vmem %s1, %s212
        %s214 = smul.u32 2, %s20
      $region24: #{masked_l1.1} parent=15 // pred_fallthru
        _
      // Predicated region
      $region25: #{masked_l1.1} parent=15 // pred_check
        %p215 = pneg %p108
      $region26: #{masked_l1.1} parent=15 // pred_check_branch
        %217 = sbr.rel (%p215) target = $region28
      $region27: #{masked_l1.1} parent=15 // pred_region
        %s218 = smul.u32 2, %s20
        %p219 = scmp.lt.s32.totalorder %s19, 1
        %s220 = scalar_select %p219, %s19, 1
        %p221 = scmp.lt.s32.totalorder %s218, 1
        %s222 = scalar_select %p221, %s218, 1
        %s223 = smul.addr %s220, 2
        %s224 = sadd.s32 %s222, %s223
        %s225 = scalar_lea.vmem %s2, %s224
        %s226 = smul.u32 2, %s20
      $region28: #{masked_l1.1} parent=15 // pred_fallthru
        _
    $region16: #{masked_l1.1} parent=5 // pred_fallthru
      _
    %p227 = scmp.le.s32.totalorder 1, %s11
    %p228 = scmp.lt.s32.totalorder %s11, 3
    %p229 = pnand %p227, %p228
    %p230 = pneg %p229
    // Predicated region
    $region29: #{masked_l1.1} parent=5 // pred_check
      _
    $region30: #{masked_l1.1} parent=5 // pred_check_branch
      %232 = sbr.rel (%p229) target = $region32
    $region31: #{masked_l1.1} parent=5 // pred_region
      %s233 = ssub.s32 %s11, 1
      %s234 = smul.u32 2, %s23
      %p235 = scmp.lt.s32.totalorder %s22, 1
      %s236 = scalar_select %p235, %s22, 1
      %p237 = scmp.lt.s32.totalorder %s234, 1
      %s238 = scalar_select %p237, %s234, 1
      %s239 = smul.addr %s236, 2
      %s240 = sadd.s32 %s238, %s239
      %s241 = smul.addr %s240, 4
      %s242 = scalar_lea.vmem %s0, %s241
      %p243 = pneg %p58
      %p244 = pneg %p55
      %s245 = smul.u32 2, %s23
      %p246 = scmp.lt.s32.totalorder %s22, 1
      %s247 = scalar_select %p246, %s22, 1
      %p248 = scmp.lt.s32.totalorder %s245, 1
      %s249 = scalar_select %p248, %s245, 1
      %s250 = smul.addr %s247, 2
      %s251 = sadd.s32 %s249, %s250
      %s252 = smul.addr %s251, 4
      %s253 = scalar_lea.vmem %s1, %s252
      %p254 = pneg %p86
      %p255 = pneg %p83
      %s256 = smul.u32 2, %s23
      %p257 = scmp.lt.s32.totalorder %s22, 1
      %s258 = scalar_select %p257, %s22, 1
      %p259 = scmp.lt.s32.totalorder %s256, 1
      %s260 = scalar_select %p259, %s256, 1
      %s261 = smul.addr %s258, 2
      %s262 = sadd.s32 %s260, %s261
      %s263 = scalar_lea.vmem %s2, %s262
      %p264 = pneg %p114
      %p265 = pneg %p111
      %p266 = pneg %p142
      %p267 = pneg %p139
      %p268 = scmp.lt.s32.totalorder %s21, 0
      %s269 = scalar_select %p268, %s21, 0
      %p270 = scmp.lt.s32.totalorder %s22, 1
      %s271 = scalar_select %p270, %s22, 1
      %s272 = smul.addr %s269, 2
      %s273 = sadd.s32 %s271, %s272
      %s274 = scalar_lea.vmem %s3, %s273
      %p275 = pneg %p170
      %p276 = pneg %p167
      %p277 = scmp.lt.s32.totalorder %s21, 0
      %s278 = scalar_select %p277, %s21, 0
      %p279 = scmp.lt.s32.totalorder %s22, 1
      %s280 = scalar_select %p279, %s22, 1
      %s281 = smul.addr %s278, 2
      %s282 = sadd.s32 %s280, %s281
      %s283 = scalar_lea.vmem %s4, %s282
      %s284 = smul.u32 2, %s23
      %p285 = scmp.lt.s32.totalorder %s22, 1
      %s286 = scalar_select %p285, %s22, 1
      %p287 = scmp.lt.s32.totalorder %s284, 1
      %s288 = scalar_select %p287, %s284, 1
      %s289 = smul.addr %s286, 2
      %s290 = sadd.s32 %s288, %s289
      %s291 = smul.addr %s290, 4
      %s292 = scalar_lea.vmem %s0, %s291
      %s293 = smul.u32 2, %s23
      %s294 = smul.u32 2, %s23
      %p295 = scmp.lt.s32.totalorder %s22, 1
      %s296 = scalar_select %p295, %s22, 1
      %p297 = scmp.lt.s32.totalorder %s294, 1
      %s298 = scalar_select %p297, %s294, 1
      %s299 = smul.addr %s296, 2
      %s300 = sadd.s32 %s298, %s299
      %s301 = smul.addr %s300, 4
      %s302 = scalar_lea.vmem %s1, %s301
      %s303 = smul.u32 2, %s23
      %s304 = smul.u32 2, %s23
      %p305 = scmp.lt.s32.totalorder %s22, 1
      %s306 = scalar_select %p305, %s22, 1
      %p307 = scmp.lt.s32.totalorder %s304, 1
      %s308 = scalar_select %p307, %s304, 1
      %s309 = smul.addr %s306, 2
      %s310 = sadd.s32 %s308, %s309
      %s311 = scalar_lea.vmem %s2, %s310
      %s312 = smul.u32 2, %s23
      %p313 = scmp.lt.s32.totalorder %s21, 0
      %s314 = scalar_select %p313, %s21, 0
      %p315 = scmp.lt.s32.totalorder %s22, 1
      %s316 = scalar_select %p315, %s22, 1
      %s317 = smul.addr %s314, 2
      %s318 = sadd.s32 %s316, %s317
      %s319 = scalar_lea.vmem %s3, %s318
      %p320 = scmp.lt.s32.totalorder %s21, 0
      %s321 = scalar_select %p320, %s21, 0
      %p322 = scmp.lt.s32.totalorder %s22, 1
      %s323 = scalar_select %p322, %s22, 1
      %s324 = smul.addr %s321, 2
      %s325 = sadd.s32 %s323, %s324
      %s326 = scalar_lea.vmem %s4, %s325
      %p327 = scmp.eq.s32.totalorder %s23, 0
      // Predicated region
      $region33: #{masked_l1.1} parent=31 // pred_check
        %p328 = pneg %p327
      $region34: #{masked_l1.1} parent=31 // pred_check_branch
        %330 = sbr.rel (%p328) target = $region36
      $region35: #{masked_l1.1} parent=31 // pred_region
        %331 = vst [vmem:[#allocation2] sm:$0xff] 0.0
        %332 = vst [vmem:[#allocation3] sm:$0xff] 0.0
      $region36: #{masked_l1.1} parent=31 // pred_fallthru
        _
      %v333 = vld [vmem:[%s292] sm:$0xff]
      %v334 = vld [vmem:[%s302] sm:$0xff]
      %v335 = vsub.f32 %v333, %v334
      %v336 = vand.u32 2147483647, %v335
      %v337 = vld [vmem:[%s311] sm:$0x3]
      %v338 = vunpack.c.0.s8 %v337
      %v339 = vcvt.s32.f32 %v338
      %v340 = vld [vmem:[#allocation2] sm:$0xff]
      %v342 = vlaneseq
      %v343 = vshrl.u32 %v342, 7
      %v344 = vsub.s32 0, %v343
      %v345 = vrot.slane %v339, %v344
      %v346 = vlaneseq
      %v347 = vshrl.u32 %v346, 7
      %v348 = vsub.s32 4, %v347
      %v349 = vrot.slane %v339, %v348
      %v352 = vlaneseq
      %v353 = vshrl.u32 %v352, 7
      %v354 = vsub.s32 0, %v353
      %v355 = vrot.slane %v345, %v354
      %v356 = vlaneseq
      %v357 = vshrl.u32 %v356, 7
      %v358 = vsub.s32 0, %v357
      %v359 = vrot.slane %v349, %v358
      %v362 = vcombine.low %v355, %v359
      %v364 = vmul.f32 %v336, %v362
      %v365 = vadd.f32 %v340, %v364
      %366 = vst [vmem:[#allocation2] sm:$0xff] %v365
      %v367 = vld [vmem:[#allocation3] sm:$0xff]
      %v368 = vadd.f32 %v367, %v336
      %369 = vst [vmem:[#allocation3] sm:$0xff] %v368
      // Predicated region
      $region37: #{masked_l1.1} parent=31 // pred_check
        %p370 = pneg %p327
      $region38: #{masked_l1.1} parent=31 // pred_check_branch
        %372 = sbr.rel (%p370) target = $region40
      $region39: #{masked_l1.1} parent=31 // pred_region
        %v373 = vld [vmem:[#allocation2] sm:$0xff]
        %v375 = vcombine.high %v373, %v373
        %vm377 = vcmask 1043456
        %v378 = vsel %vm377, %v373, 0.0
        %v379 = vsel %vm377, %v375, 0.0
        %v380 = vadd.f32 %v378, %v379
        %381 = vadd.xlane.f32.xlu0 %v380
        %v382 = vpop.xlane.xlu0 %381
        %v383 = vrot.slane %v382, 4
        %v384 = vadd.f32 %v382, %v383
        %v385 = vrot.slane %v384, 2
        %v386 = vadd.f32 %v384, %v385
        %v387 = vrot.slane %v386, 1
        %v388 = vadd.f32 %v386, %v387
        %s389 = vtos %v388
        %v390 = vstv %s389
        %v391 = vadd.f32 %v390, 0.0
        %392 = vst [vmem:[%s319] sm:$0x1] %v391
        %v393 = vld [vmem:[#allocation3] sm:$0xff]
        %v395 = vcombine.high %v393, %v393
        %v397 = vsel %vm377, %v393, 0.0
        %v398 = vsel %vm377, %v395, 0.0
        %v399 = vadd.f32 %v397, %v398
        %400 = vadd.xlane.f32.xlu0 %v399
        %v401 = vpop.xlane.xlu0 %400
        %v402 = vrot.slane %v401, 4
        %v403 = vadd.f32 %v401, %v402
        %v404 = vrot.slane %v403, 2
        %v405 = vadd.f32 %v403, %v404
        %v406 = vrot.slane %v405, 1
        %v407 = vadd.f32 %v405, %v406
        %s408 = vtos %v407
        %v409 = vstv %s408
        %v410 = vadd.f32 %v409, 0.0
        %411 = vst [vmem:[%s326] sm:$0x1] %v410
      $region40: #{masked_l1.1} parent=31 // pred_fallthru
        _
      %p412 = scmp.lt.s32.totalorder %s21, 0
      %s413 = scalar_select %p412, %s21, 0
      %p414 = scmp.lt.s32.totalorder %s22, 1
      %s415 = scalar_select %p414, %s22, 1
      %s416 = smul.addr %s413, 2
      %s417 = sadd.s32 %s415, %s416
      %s418 = scalar_lea.vmem %s3, %s417
      %p419 = scmp.lt.s32.totalorder %s21, 0
      %s420 = scalar_select %p419, %s21, 0
      %p421 = scmp.lt.s32.totalorder %s22, 1
      %s422 = scalar_select %p421, %s22, 1
      %s423 = smul.addr %s420, 2
      %s424 = sadd.s32 %s422, %s423
      %s425 = scalar_lea.vmem %s4, %s424
      // Predicated region
      $region41: #{masked_l1.1} parent=31 // pred_check
        %p426 = pneg %p139
      $region42: #{masked_l1.1} parent=31 // pred_check_branch
        %428 = sbr.rel (%p426) target = $region44
      $region43: #{masked_l1.1} parent=31 // pred_region
        _
      $region44: #{masked_l1.1} parent=31 // pred_fallthru
        _
      // Predicated region
      $region45: #{masked_l1.1} parent=31 // pred_check
        %p429 = pneg %p167
      $region46: #{masked_l1.1} parent=31 // pred_check_branch
        %431 = sbr.rel (%p429) target = $region48
      $region47: #{masked_l1.1} parent=31 // pred_region
        _
      $region48: #{masked_l1.1} parent=31 // pred_fallthru
        _
    $region32: #{masked_l1.1} parent=5 // pred_fallthru
      _
    %p432 = scmp.le.s32.totalorder 2, %s11
    // Predicated region
    $region49: #{masked_l1.1} parent=5 // pred_check
      %p433 = pneg %p432
    $region50: #{masked_l1.1} parent=5 // pred_check_branch
      %435 = sbr.rel (%p433) target = $region52
    $region51: #{masked_l1.1} parent=5 // pred_region
      %s436 = ssub.s32 %s11, 2
      // Predicated region
      $region53: #{masked_l1.1} parent=51 // pred_check
        %p437 = pneg %p145
      $region54: #{masked_l1.1} parent=51 // pred_check_branch
        %439 = sbr.rel (%p437) target = $region56
      $region55: #{masked_l1.1} parent=51 // pred_region
        %p440 = scmp.lt.s32.totalorder %s24, 0
        %s441 = scalar_select %p440, %s24, 0
        %p442 = scmp.lt.s32.totalorder %s25, 1
        %s443 = scalar_select %p442, %s25, 1
        %s444 = smul.addr %s441, 2
        %s445 = sadd.s32 %s443, %s444
        %s446 = scalar_lea.vmem %s3, %s445
      $region56: #{masked_l1.1} parent=51 // pred_fallthru
        _
      // Predicated region
      $region57: #{masked_l1.1} parent=51 // pred_check
        %p447 = pneg %p173
      $region58: #{masked_l1.1} parent=51 // pred_check_branch
        %449 = sbr.rel (%p447) target = $region60
      $region59: #{masked_l1.1} parent=51 // pred_region
        %p450 = scmp.lt.s32.totalorder %s24, 0
        %s451 = scalar_select %p450, %s24, 0
        %p452 = scmp.lt.s32.totalorder %s25, 1
        %s453 = scalar_select %p452, %s25, 1
        %s454 = smul.addr %s451, 2
        %s455 = sadd.s32 %s453, %s454
        %s456 = scalar_lea.vmem %s4, %s455
      $region60: #{masked_l1.1} parent=51 // pred_fallthru
        _
    $region52: #{masked_l1.1} parent=5 // pred_fallthru
      _
  $region6: #{masked_l1.1} parent=0 // loop_footer
    %s15 = sadd.s32 1, %s11
  $region7: #{masked_l1.1} parent=0 // loop_footer_branch
    %10 = sbr.rel target = $region3
  $region8: #{masked_l1.1} parent=0 // loop_exit
    _

</llo_original>
